<compile_context>
chip_gen: v6e
topology: v6e:2x2x1
jax: 0.10.0
libtpu: 0.0.40
codegen_flags: <defaults>
</compile_context>

<pallas_src>
import functools

import jax
import jax.numpy as jnp
from jax.experimental import pallas as pl
from jax.experimental.pallas import tpu as pltpu


# ----------------------------- small helpers --------------------------------

_MAX_SINGLE_K = 2048   # collapse the K reduction into one block up to this F_in
_MAX_SINGLE_N = 512    # keep F_out un-tiled (and unpadded) up to this width
_MAX_TB = 512


def _round_up(x: int, m: int) -> int:
    return ((x + m - 1) // m) * m


def _sublane_pack(dtype) -> int:
    # f32 -> 8, bf16 -> 16, int8/fp8 -> 32
    return max(8, 32 // jnp.dtype(dtype).itemsize)


def _largest_divisor_tile(total: int, candidates, align: int) -> int:
    for c in candidates:
        if c % align == 0 and total % c == 0:
            return c
    return align


# ------------------------------- kernels ------------------------------------

def _policy_head_kernel_single_k(x_ref, w_ref, b_ref, o_ref):
    """Whole reduction in one MXU pass: dot + bias + cast + store, no scratch."""
    acc = jnp.dot(x_ref[...], w_ref[...], preferred_element_type=jnp.float32)
    o_ref[...] = (acc + b_ref[...]).astype(o_ref.dtype)


def _policy_head_kernel_kgrid_f32out(x_ref, w_ref, b_ref, o_ref):
    """K-grid reduction, f32 output: accumulate directly into the resident o_ref
    block (its index_map ignores k), so no VMEM scratch is needed."""
    k = pl.program_id(2)

    @pl.when(k == 0)
    def _init():
        o_ref[...] = jnp.broadcast_to(b_ref[...], o_ref.shape).astype(o_ref.dtype)

    o_ref[...] += jnp.dot(x_ref[...], w_ref[...], preferred_element_type=jnp.float32)


def _policy_head_kernel_kgrid_scratch(x_ref, w_ref, b_ref, o_ref, acc_ref):
    """K-grid reduction for low-precision outputs: f32 scratch accumulator."""
    k = pl.program_id(2)

    @pl.when(k == 0)
    def _init():
        acc_ref[...] = jnp.zeros_like(acc_ref)

    acc_ref[...] += jnp.dot(x_ref[...], w_ref[...], preferred_element_type=jnp.float32)

    @pl.when(k == pl.num_programs(2) - 1)
    def _finalize():
        o_ref[...] = (acc_ref[...] + b_ref[...]).astype(o_ref.dtype)


# --------------------------- parameter preparation ---------------------------

def prepare_policy_head_params(w_pt, b):
    """One-time layout prep (never done inside the forward).

    w_pt: PyTorch-layout weight (F_out, F_in);  b: (F_out,) or (1, F_out).
    Returns (w_prep (Kp, Np), b_prep (1, Np)) where padding (if any) is zeros.
    """
    F_out, F_in = w_pt.shape
    w_t = jnp.transpose(w_pt)                       # (F_in, F_out)
    b2 = jnp.reshape(b, (1, F_out))

    # K: pad to a 128 multiple only if F_in is too large for a single K block.
    Kp = F_in if F_in <= _MAX_SINGLE_K else _round_up(F_in, 128)
    # N: keep unpadded (masked tail store in-kernel) unless F_out must be tiled.
    Np = F_out if F_out <= _MAX_SINGLE_N else _round_up(F_out, 128)

    if (Kp, Np) != (F_in, F_out):
        w_t = jnp.pad(w_t, ((0, Kp - F_in), (0, Np - F_out)))
        b2 = jnp.pad(b2, ((0, 0), (0, Np - F_out)))
    return w_t, b2


# --------------------------------- forward ----------------------------------

@functools.partial(jax.jit, static_argnames=("out_features",))
def policy_head_forward(x, w_prep, b_prep, *, out_features=None):
    """x: (B, F_in), w_prep: (Kp, Np), b_prep: (1, Np) -> (B, out_features).

    Equivalent to the PyTorch module's default ('logits') forward: x @ W.T + b.
    """
    B, F_in = x.shape
    Kp, Np = w_prep.shape
    F_out = Np if out_features is None else out_features

    pack = _sublane_pack(x.dtype)
    in_item = jnp.dtype(x.dtype).itemsize
    w_item = jnp.dtype(w_prep.dtype).itemsize
    out_dtype = x.dtype
    out_item = jnp.dtype(out_dtype).itemsize

    # ---- B axis -------------------------------------------------------------
    if B <= _MAX_TB:
        Bp = B
        if B >= 2 * pack and B % (2 * pack) == 0:
            TB = B // 2          # >=2 tiles so v7x's two TensorCores both get work
        else:
            TB = B               # block == full dim, no padding needed
    else:
        Bp = _round_up(B, pack)  # pad only to the dtype's sublane pack
        TB = _largest_divisor_tile(Bp, (512, 256, 128, 64, 32, 16, 8), pack)

    # ---- N axis -------------------------------------------------------------
    if Np <= _MAX_SINGLE_N:
        TN = Np                  # full-N block (masked tail vst for tiny F_out)
    else:
        TN = _largest_divisor_tile(Np, (512, 256, 128), 128)

    # ---- K axis -------------------------------------------------------------
    single_k = Kp <= _MAX_SINGLE_K
    TK = Kp if single_k else _largest_divisor_tile(Kp, (2048, 1024, 512, 256, 128), 128)

    # ---- minimal per-call padding of x (<= pack-1 rows, <= 127 cols) --------
    if (Bp, Kp) != (B, F_in):
        x_in = jnp.pad(x, ((0, Bp - B), (0, Kp - F_in)))
    else:
        x_in = x

    # ---- specs / grid --------------------------------------------------------
    if single_k:
        grid = (Bp // TB, Np // TN)
        kernel = _policy_head_kernel_single_k
        in_specs = [
            pl.BlockSpec((TB, Kp), lambda i, j: (i, 0)),
            pl.BlockSpec((Kp, TN), lambda i, j: (0, j)),
            pl.BlockSpec((1, TN), lambda i, j: (0, j)),
        ]
        out_specs = pl.BlockSpec((TB, TN), lambda i, j: (i, j))
        scratch_shapes = []
        dim_sem = ("parallel", "parallel")
    else:
        grid = (Bp // TB, Np // TN, Kp // TK)  # reduction axis (K) last
        in_specs = [
            pl.BlockSpec((TB, TK), lambda i, j, k: (i, k)),
            pl.BlockSpec((TK, TN), lambda i, j, k: (k, j)),
            pl.BlockSpec((1, TN), lambda i, j, k: (0, j)),
        ]
        out_specs = pl.BlockSpec((TB, TN), lambda i, j, k: (i, j))
        dim_sem = ("parallel", "parallel", "arbitrary")
        if jnp.dtype(out_dtype) == jnp.dtype(jnp.float32):
            kernel = _policy_head_kernel_kgrid_f32out
            scratch_shapes = []
        else:
            kernel = _policy_head_kernel_kgrid_scratch
            scratch_shapes = [pltpu.VMEM((TB, TN), jnp.float32)]

    # ---- compiler params (explicit VMEM limit only when v5e's 16 MiB default
    #      would be exceeded by the double-buffered working set) --------------
    k_blk = Kp if single_k else TK
    working_set = (
        2 * (TB * k_blk * in_item + k_blk * TN * w_item + TN * w_item)
        + 2 * TB * TN * out_item
        + (TB * TN * 4 if scratch_shapes else 0)
    )
    cp_kwargs = {"dimension_semantics": dim_sem}
    if working_set > 14 * 1024 * 1024:
        cp_kwargs["vmem_limit_bytes"] = 32 * 1024 * 1024

    # ---- advisory cost estimate: true itemsizes, unpadded shapes ------------
    cost = pl.CostEstimate(
        flops=2 * B * F_in * F_out,
        transcendentals=0,
        bytes_accessed=(in_item * B * F_in
                        + w_item * (F_in * F_out + F_out)
                        + out_item * B * F_out),
    )

    out = pl.pallas_call(
        kernel,
        out_shape=jax.ShapeDtypeStruct((Bp, Np), out_dtype),
        grid_spec=pltpu.PrefetchScalarGridSpec(
            num_scalar_prefetch=0,
            grid=grid,
            in_specs=in_specs,
            out_specs=out_specs,
            scratch_shapes=scratch_shapes,
        ),
        compiler_params=pltpu.CompilerParams(**cp_kwargs),
        cost_estimate=cost,
    )(x_in, w_prep, b_prep)

    if Bp != B or Np != F_out:
        out = out[:B, :F_out]
    return out


# ----------------------------------- demo -----------------------------------

if __name__ == "__main__":
    # Small shapes consistent with the module's forward:
    # (batch, in_features) -> (batch, out_features)
    batch, in_features, out_features = 2, 32, 8

    key = jax.random.PRNGKey(0)
    kx, kw, kb = jax.random.split(key, 3)

    x = jax.random.normal(kx, (batch, in_features), dtype=jnp.float32)

    # outer_init in catalyst: small uniform init U(-3e-3, 3e-3) for weight and bias.
    # PyTorch weight layout is (out_features, in_features).
    w_pt = jax.random.uniform(
        kw, (out_features, in_features), minval=-3e-3, maxval=3e-3, dtype=jnp.float32
    )
    b = jax.random.uniform(
        kb, (out_features,), minval=-3e-3, maxval=3e-3, dtype=jnp.float32
    )

    # One-time parameter layout prep (transpose; padding only if ever needed).
    w_prep, b_prep = prepare_policy_head_params(w_pt, b)

    out = policy_head_forward(x, w_prep, b_prep, out_features=out_features)
    out = jax.block_until_ready(out)

    # Cross-check against the plain-JAX reference of the same forward pass.
    ref = x @ w_pt.T + b
    assert out.shape == (batch, out_features)
    assert jnp.allclose(out, ref, atol=1e-5, rtol=1e-5)

    # TODO(synk): 'categorical'/'gauss'/'real_nvp' policy_net branches (sampling
    # heads) are not exercised by the default constructor and are not implemented.
    print("KERNEL_OK")
</pallas_src>

<mosaic_0001>
module attributes {stable_mosaic.version = 11 : i64} {
  func.func @_policy_head_kernel_single_k(%arg0: i32, %arg1: i32, %arg2: memref<2x32xf32, #tpu.memory_space<vmem>>, %arg3: memref<32x8xf32, #tpu.memory_space<vmem>>, %arg4: memref<1x8xf32, #tpu.memory_space<vmem>>, %arg5: memref<2x8xf32, #tpu.memory_space<vmem>>) attributes {dimension_semantics = [#tpu.dimension_semantics<parallel>, #tpu.dimension_semantics<parallel>], iteration_bounds = array<i64: 1, 1>, scalar_prefetch = 0 : i64, scratch_operands = 0 : i64, tpu.core_type = #tpu.core_type<tc>, window_params = [{transform_indices = @transform_0, window_bounds = array<i64: 2, 32>}, {transform_indices = @transform_1, window_bounds = array<i64: 32, 8>}, {transform_indices = @transform_2, window_bounds = array<i64: 1, 8>}, {transform_indices = @transform_3, window_bounds = array<i64: 2, 8>}]} {
    %c0 = arith.constant 0 : index
    %c0_0 = arith.constant 0 : index
    %0 = vector.load %arg2[%c0, %c0_0] : memref<2x32xf32, #tpu.memory_space<vmem>>, vector<2x32xf32>
    %c0_1 = arith.constant 0 : index
    %c0_2 = arith.constant 0 : index
    %1 = vector.load %arg3[%c0_1, %c0_2] : memref<32x8xf32, #tpu.memory_space<vmem>>, vector<32x8xf32>
    %cst = arith.constant dense<0.000000e+00> : vector<2x8xf32>
    %2 = tpu.matmul %0, %1, %cst {dimension_numbers = #tpu.dot_dimension_numbers<[1], [0], [0], [1], [0, 0, 1, 1], [], []>} : vector<2x32xf32>, vector<32x8xf32>, vector<2x8xf32> -> vector<2x8xf32>
    %c0_3 = arith.constant 0 : index
    %c0_4 = arith.constant 0 : index
    %3 = vector.load %arg4[%c0_3, %c0_4] : memref<1x8xf32, #tpu.memory_space<vmem>>, vector<1x8xf32>
    %4 = vector.broadcast %3 : vector<1x8xf32> to vector<2x8xf32>
    %5 = arith.addf %2, %4 : vector<2x8xf32>
    %c0_5 = arith.constant 0 : index
    %c0_6 = arith.constant 0 : index
    %6 = vector.load %arg5[%c0_5, %c0_6] : memref<2x8xf32, #tpu.memory_space<vmem>>, vector<2x8xf32>
    tpu.vector_store %arg5[%c0_5, %c0_6], %5 {strides = array<i32>} : memref<2x8xf32, #tpu.memory_space<vmem>>, vector<2x8xf32>,
    return
  }
  func.func @transform_0(%arg0: i32, %arg1: i32) -> (i32, i32) {
    %c0_i32 = arith.constant 0 : i32
    %c0_i32_0 = arith.constant 0 : i32
    return %arg0, %c0_i32 : i32, i32
  }
  func.func @transform_1(%arg0: i32, %arg1: i32) -> (i32, i32) {
    %c0_i32 = arith.constant 0 : i32
    %c0_i32_0 = arith.constant 0 : i32
    return %c0_i32, %arg1 : i32, i32
  }
  func.func @transform_2(%arg0: i32, %arg1: i32) -> (i32, i32) {
    %c0_i32 = arith.constant 0 : i32
    %c0_i32_0 = arith.constant 0 : i32
    return %c0_i32, %arg1 : i32, i32
  }
  func.func @transform_3(%arg0: i32, %arg1: i32) -> (i32, i32) {
    %c0_i32 = arith.constant 0 : i32
    return %arg0, %arg1 : i32, i32
  }
}

</mosaic_0001>

<llo_original>
// kernel: policy_head_forward.1
$region0: #{policy_head_forward.1}
  #allocation0 [shape = 'u32[]', space=smem, size = 0x4, offset = 0x4, fixed_abs, tag = 'smem constant byte address 0x4 - core index']
  #allocation1 [shape = 'u32[144,128]{1,0:T(1,128)}', space=vmem, size = 0x12000, scoped, tag = 'internal scratch']
  %s0 = inlined_call_operand.vmem [shape: f32[2,32], index: 0, kind: input, shape index: {}]
  %s1 = inlined_call_operand.vmem [shape: f32[32,8], index: 1, kind: input, shape index: {}]
  %s2 = inlined_call_operand.vmem [shape: f32[1,8], index: 2, kind: input, shape index: {}]
  %s3 = inlined_call_operand.hbm [shape: f32[2,8], index: 3, kind: output, shape index: {}]
  %s4 = sld [smem:[#allocation0]]
  $region22: #{policy_head_forward.1} parent=0
    _
  %s6 = ssub.s32 1, %s4
  %s7 = scalar_select 0, %s6, %s4
  $region1: #{policy_head_forward.1} parent=0
    #allocation2 [shape = 'u8[1024]{0}', space=vmem, size = 0x400, scoped, tag = 'output window, operand 0, single buffered']
    #allocation3 [shape = 's32[1]{0}', space=sflag, size = 0x4, scoped, tag = 'scoped memory for policy_head_forward.1']
    %8 = vsyncpa [#allocation3], 0
    // Predicated region
    $region2: #{policy_head_forward.1} parent=1 // pred_check
      _
    $region3: #{policy_head_forward.1} parent=1 // pred_check_branch
      %10 = sbr.rel (0) target = $region5
    $region4: #{policy_head_forward.1} parent=1 // pred_region
      _
    $region5: #{policy_head_forward.1} parent=1 // pred_fallthru
      _
    // Predicated region
    $region6: #{policy_head_forward.1} parent=1 // pred_check
      _
    $region7: #{policy_head_forward.1} parent=1 // pred_check_branch
      %12 = sbr.rel (0) target = $region9
    $region8: #{policy_head_forward.1} parent=1 // pred_region
      _
    $region9: #{policy_head_forward.1} parent=1 // pred_fallthru
      _
    // Predicated region
    $region10: #{policy_head_forward.1} parent=1 // pred_check
      _
    $region11: #{policy_head_forward.1} parent=1 // pred_check_branch
      %14 = sbr.rel (0) target = $region13
    $region12: #{policy_head_forward.1} parent=1 // pred_region
      _
    $region13: #{policy_head_forward.1} parent=1 // pred_fallthru
      _
    %v15 = vld [vmem:[%s0] sm:$0x3]
    %v16 = vld [vmem:[%s1] sm:$0xff]
    %v17 = vld [vmem:[%s1 + $0x8] sm:$0xff]
    %v18 = vld [vmem:[%s1 + $0x10] sm:$0xff]
    %v19 = vld [vmem:[%s1 + $0x18] sm:$0xff]
    %v20 = vld [vmem:[%s2] sm:$0x1]
    %v22 = vlaneseq
    %v23 = vshrl.u32 %v22, 7
    %v24 = vsub.s32 0, %v23
    %v25 = vrot.slane %v20, %v24
    %vm27 = vcmask 261120
    %v29 = vsel %vm27, %v15, 0
    %31 = vmatprep.subr.mxu0 0.0
    %32 = vmatpush1.msra.mxu0 0.0
    %33 = vmatprep.subr.mxu0 0.0
    %34 = vmatpush1.msra.mxu0 0.0
    %35 = vmatprep.subr.mxu0 0.0
    %36 = vmatpush1.msra.mxu0 0.0
    %37 = vmatprep.subr.mxu0 0.0
    %38 = vmatpush1.msra.mxu0 0.0
    %39 = vmatprep.subr.mxu0 0.0
    %40 = vmatpush1.msra.mxu0 0.0
    %41 = vmatprep.subr.mxu0 0.0
    %42 = vmatpush1.msra.mxu0 0.0
    %43 = vmatprep.subr.mxu0 0.0
    %44 = vmatpush1.msra.mxu0 0.0
    %45 = vmatprep.subr.mxu0 0.0
    %46 = vmatpush1.msra.mxu0 0.0
    %47 = vmatprep.subr.mxu0 0.0
    %48 = vmatpush1.msra.mxu0 0.0
    %49 = vmatprep.subr.mxu0 0.0
    %50 = vmatpush1.msra.mxu0 0.0
    %51 = vmatprep.subr.mxu0 0.0
    %52 = vmatpush1.msra.mxu0 0.0
    %53 = vmatprep.subr.mxu0 0.0
    %54 = vmatpush1.msra.mxu0 0.0
    %55 = vmatprep.subr.mxu0 0.0
    %56 = vmatpush1.msra.mxu0 %v19
    %57 = vmatprep.subr.mxu0 0.0
    %58 = vmatpush1.msra.mxu0 %v18
    %59 = vmatprep.subr.mxu0 0.0
    %60 = vmatpush1.msra.mxu0 %v17
    %61 = vmatprep.subr.mxu0 0.0
    %62 = vmatpush1.msra.mxu0 %v16
    %63 = vmatprep.subr.mxu0 0.0
    %64 = vmatpush2.msra.mxu0 0.0
    %65 = vmatprep.subr.mxu0 0.0
    %66 = vmatpush2.msra.mxu0 0.0
    %67 = vmatprep.subr.mxu0 0.0
    %68 = vmatpush2.msra.mxu0 0.0
    %69 = vmatprep.subr.mxu0 0.0
    %70 = vmatpush2.msra.mxu0 0.0
    %71 = vmatprep.subr.mxu0 0.0
    %72 = vmatpush2.msra.mxu0 0.0
    %73 = vmatprep.subr.mxu0 0.0
    %74 = vmatpush2.msra.mxu0 0.0
    %75 = vmatprep.subr.mxu0 0.0
    %76 = vmatpush2.msra.mxu0 0.0
    %77 = vmatprep.subr.mxu0 0.0
    %78 = vmatpush2.msra.mxu0 0.0
    %79 = vmatprep.subr.mxu0 0.0
    %80 = vmatpush2.msra.mxu0 0.0
    %81 = vmatprep.subr.mxu0 0.0
    %82 = vmatpush2.msra.mxu0 0.0
    %83 = vmatprep.subr.mxu0 0.0
    %84 = vmatpush2.msra.mxu0 0.0
    %85 = vmatprep.subr.mxu0 0.0
    %86 = vmatpush2.msra.mxu0 0.0
    %87 = vmatprep.subr.mxu0 0.0
    %88 = vmatpush2.msra.mxu0 0.0
    %89 = vmatprep.subr.mxu0 0.0
    %90 = vmatpush2.msra.mxu0 0.0
    %91 = vmatprep.subr.mxu0 0.0
    %92 = vmatpush2.msra.mxu0 0.0
    %93 = vmatprep.subr.mxu0 0.0
    %94 = vmatpush2.msra.mxu0 0.0
    %95 = vmatprep.mubr.f32.mxu0 0.0
    %96 = vmatmul.mubr.f32.gmra.mxu0 %v29
    %v97 = vpop.f32.mrf.mxu0
    %v98 = vadd.f32 %v25, %v97
    %v99 = vpop.f32.mrf.mxu0
    %100 = vdwg.mxu0
    %vm101 = vcmask 58368
    %102 = vst.msk [vmem:[#allocation2] sm:$0x3] %vm101, %v98
    // Predicated region
    $region14: #{policy_head_forward.1} parent=1 // pred_check
      _
    $region15: #{policy_head_forward.1} parent=1 // pred_check_branch
      %104 = sbr.rel (0) target = $region17
    $region16: #{policy_head_forward.1} parent=1 // pred_region
      %s106 = ssub.s32 32, 32
      %107 = vsyncadd [#allocation3], %s106
      %s109 = sshll.u32 [#allocation2], 4
      %s110 = int_to_ptr.vmem [resolvable:$true] %s109
      %112 = dma.vmem_to_hbm [thread:$0]  %s110, 32, %s3, [#allocation3]
    $region17: #{policy_head_forward.1} parent=1 // pred_fallthru
      _
    // Predicated region
    $region18: #{policy_head_forward.1} parent=1 // pred_check
      _
    $region19: #{policy_head_forward.1} parent=1 // pred_check_branch
      %114 = sbr.rel (0) target = $region21
    $region20: #{policy_head_forward.1} parent=1 // pred_region
      %115 = dma.done [#allocation3], 32
    $region21: #{policy_head_forward.1} parent=1 // pred_fallthru
      _
    %116 = vsyncpa [#allocation3], 1

</llo_original>
